<compile_context>
chip_gen: v5e
topology: v5e:2x2
jax: 0.10.0
libtpu: 0.0.40
codegen_flags: <defaults>
</compile_context>

<pallas_src>
import functools

import jax
import jax.numpy as jnp
from jax.experimental import pallas as pl
from jax.experimental.pallas import tpu as pltpu


def firstnet_kernel(x_ref, w1_ref, b1_ref, w2_ref, b2_ref, o_ref):
    """One batch tile of the forward pass (weights are VMEM-resident).

    x_ref : (TB, D)   flattened input tile, float32 (cast to bf16 in-kernel)
    w1_ref: (D, H0)   fc[0] weight (in x out), bfloat16
    b1_ref: (1, H0)   fc[0] bias, float32
    w2_ref: (H0, H1)  fc[1] weight, float32
    b2_ref: (1, H1)   fc[1] bias, float32
    o_ref : (TB, H1)  log_softmax output, float32
    """
    # In-kernel bf16 cast (free VPU work under the w1 / x DMAs).
    x = x_ref[...].astype(jnp.bfloat16)

    # fc[0] + ReLU  (bf16 MXU matmul, f32 accumulate)
    h = jnp.dot(x, w1_ref[...], preferred_element_type=jnp.float32) + b1_ref[...]
    h = jnp.maximum(h, 0.0)

    # fc[1] + ReLU  (tiny 32x32 f32 matmul)
    h = jnp.dot(h, w2_ref[...], preferred_element_type=jnp.float32) + b2_ref[...]
    h = jnp.maximum(h, 0.0)

    # log_softmax over dim=1 (numerically stable); EUP/XLU work is free here.
    m = jnp.max(h, axis=1, keepdims=True)
    shifted = h - m
    lse = jnp.log(jnp.sum(jnp.exp(shifted), axis=1, keepdims=True))
    o_ref[...] = (shifted - lse).astype(o_ref.dtype)


@functools.partial(jax.jit, static_argnames=("image_size", "batch_tile"))
def firstnet_forward(x_nchw, params, *, image_size, batch_tile=1024):
    """Flatten NCHW input and launch a batch-tiled, weights-resident Pallas call."""
    b = x_nchw.shape[0]
    # Free contiguous view, same as torch's x.view(-1, image_size).
    # No dtype cast here: the bf16 cast happens inside the kernel.
    x2d = x_nchw.reshape(b, image_size)

    w1, b1, w2, b2 = params  # w1 stored as bfloat16; rest f32
    d = image_size
    h0 = w1.shape[1]
    h1 = w2.shape[1]

    # Batch tiling: full batch in one step when small / not evenly divisible,
    # otherwise TB-row tiles (weights stay VMEM-resident across steps).
    if b <= batch_tile or b % batch_tile != 0:
        tb = b
    else:
        tb = batch_tile
    grid = (b // tb,)

    batch_map = lambda i: (i, 0)   # x / out blocks walk the batch axis
    const_map = lambda i: (0, 0)   # weights / biases resident across steps

    cost = pl.CostEstimate(
        flops=2 * b * d * h0 + 2 * b * h0 * h1,
        transcendentals=b * (h1 + 1),          # exp per logit + log per row
        bytes_accessed=(x2d.size * x2d.dtype.itemsize
                        + w1.size * w1.dtype.itemsize
                        + b1.size * b1.dtype.itemsize
                        + w2.size * w2.dtype.itemsize
                        + b2.size * b2.dtype.itemsize
                        + b * h1 * 4),
    )

    return pl.pallas_call(
        firstnet_kernel,
        out_shape=jax.ShapeDtypeStruct((b, h1), jnp.float32),
        grid=grid,
        in_specs=[
            pl.BlockSpec((tb, d), batch_map),
            pl.BlockSpec((d, h0), const_map),
            pl.BlockSpec((1, h0), const_map),
            pl.BlockSpec((h0, h1), const_map),
            pl.BlockSpec((1, h1), const_map),
        ],
        out_specs=pl.BlockSpec((tb, h1), batch_map),
        compiler_params=pltpu.CompilerParams(
            dimension_semantics=("parallel",),
        ),
        cost_estimate=cost,
    )(x2d, w1, b1, w2, b2)


def init_linear(key, fan_in, fan_out, weight_dtype=jnp.float32):
    """Deterministic torch.nn.Linear-style init: U(-1/sqrt(fan_in), +)."""
    kw, kb = jax.random.split(key)
    bound = 1.0 / jnp.sqrt(fan_in)
    # Stored as (in, out) so the kernel does x @ W directly.
    w = jax.random.uniform(kw, (fan_in, fan_out), jnp.float32, -bound, bound)
    b = jax.random.uniform(kb, (1, fan_out), jnp.float32, -bound, bound)
    return w.astype(weight_dtype), b


def reference_forward_bf16(x_nchw, params, image_size):
    """Reference following the same bf16 cast / f32 accumulation as the kernel."""
    w1, b1, w2, b2 = params
    x = x_nchw.reshape(-1, image_size).astype(jnp.bfloat16)
    h = jnp.dot(x, w1, preferred_element_type=jnp.float32) + b1
    h = jnp.maximum(h, 0.0)
    h = jnp.maximum(jnp.dot(h, w2, preferred_element_type=jnp.float32) + b2, 0.0)
    return jax.nn.log_softmax(h, axis=1)


def reference_forward_f32(x_nchw, params, image_size):
    """Full-f32 reference (sanity check for the bf16 weight/input cast)."""
    w1, b1, w2, b2 = params
    x = x_nchw.reshape(-1, image_size)
    h = jnp.maximum(x @ w1.astype(jnp.float32) + b1, 0.0)
    h = jnp.maximum(h @ w2 + b2, 0.0)
    return jax.nn.log_softmax(h, axis=1)


if __name__ == "__main__":
    # Small shapes consistent with the module: image_size = C*H*W = 4*16*16.
    B, C, H, W = 2, 4, 16, 16
    image_size = C * H * W                # 1024
    network_shape = [32, 32, 10]          # fc: 1024->32, 32->32, 32->10

    key = jax.random.PRNGKey(0)
    kx, k0, k1, k2 = jax.random.split(key, 4)

    x = jax.random.normal(kx, (B, C, H, W), jnp.float32)

    # fc[0]: bf16 weight (the only non-trivial HBM transfer); bias stays f32.
    w1, b1 = init_linear(k0, image_size, network_shape[0], weight_dtype=jnp.bfloat16)
    # fc[1]: tiny, keep f32.
    w2, b2 = init_linear(k1, network_shape[0], network_shape[1])
    # fc[-1] (32 -> 10) exists in __init__ but is never used in forward()
    # (the loop stops at len(fc)-1) -- created here only for fidelity.
    _w3_unused, _b3_unused = init_linear(k2, network_shape[1], network_shape[2])

    params = (w1, b1, w2, b2)

    out = firstnet_forward(x, params, image_size=image_size)
    out = jax.block_until_ready(out)

    assert out.shape == (B, network_shape[1])

    # Exact-path check vs a reference that uses the same bf16 casts.
    ref_bf16 = reference_forward_bf16(x, params, image_size)
    assert jnp.allclose(out, ref_bf16, atol=1e-4, rtol=1e-4), "mismatch vs bf16 reference"

    # Loose check vs a full-f32 reference (bf16 casts introduce ~1e-3 err).
    ref_f32 = reference_forward_f32(x, params, image_size)
    assert jnp.allclose(out, ref_f32, atol=5e-2, rtol=5e-2), "mismatch vs f32 reference"

    print("KERNEL_OK")
</pallas_src>

<mosaic_0001>
module attributes {stable_mosaic.version = 11 : i64} {
  func.func @firstnet_kernel(%arg0: i32, %arg1: memref<2x1024xf32, #tpu.memory_space<vmem>>, %arg2: memref<1024x32xbf16, #tpu.memory_space<vmem>>, %arg3: memref<1x32xf32, #tpu.memory_space<vmem>>, %arg4: memref<32x32xf32, #tpu.memory_space<vmem>>, %arg5: memref<1x32xf32, #tpu.memory_space<vmem>>, %arg6: memref<2x32xf32, #tpu.memory_space<vmem>>) attributes {dimension_semantics = [#tpu.dimension_semantics<parallel>], iteration_bounds = array<i64: 1>, scalar_prefetch = 0 : i64, scratch_operands = 0 : i64, tpu.core_type = #tpu.core_type<tc>, window_params = [{transform_indices = @transform_0, window_bounds = array<i64: 2, 1024>}, {pipeline_mode = #tpu.pipeline_mode<synchronous>, transform_indices = @transform_1, window_bounds = array<i64: 1024, 32>}, {pipeline_mode = #tpu.pipeline_mode<synchronous>, transform_indices = @transform_2, window_bounds = array<i64: 1, 32>}, {pipeline_mode = #tpu.pipeline_mode<synchronous>, transform_indices = @transform_3, window_bounds = array<i64: 32, 32>}, {pipeline_mode = #tpu.pipeline_mode<synchronous>, transform_indices = @transform_4, window_bounds = array<i64: 1, 32>}, {transform_indices = @transform_5, window_bounds = array<i64: 2, 32>}]} {
    %c0 = arith.constant 0 : index
    %c0_0 = arith.constant 0 : index
    %0 = vector.load %arg1[%c0, %c0_0] : memref<2x1024xf32, #tpu.memory_space<vmem>>, vector<2x1024xf32>
    %1 = arith.truncf %0 : vector<2x1024xf32> to vector<2x1024xbf16>
    %c0_1 = arith.constant 0 : index
    %c0_2 = arith.constant 0 : index
    %2 = vector.load %arg2[%c0_1, %c0_2] : memref<1024x32xbf16, #tpu.memory_space<vmem>>, vector<1024x32xbf16>
    %cst = arith.constant dense<0.000000e+00> : vector<2x32xf32>
    %3 = tpu.matmul %1, %2, %cst {dimension_numbers = #tpu.dot_dimension_numbers<[1], [0], [0], [1], [0, 0, 1, 1], [], []>} : vector<2x1024xbf16>, vector<1024x32xbf16>, vector<2x32xf32> -> vector<2x32xf32>
    %c0_3 = arith.constant 0 : index
    %c0_4 = arith.constant 0 : index
    %4 = vector.load %arg3[%c0_3, %c0_4] : memref<1x32xf32, #tpu.memory_space<vmem>>, vector<1x32xf32>
    %5 = vector.broadcast %4 : vector<1x32xf32> to vector<2x32xf32>
    %6 = arith.addf %3, %5 : vector<2x32xf32>
    %cst_5 = arith.constant 0.000000e+00 : f32
    %7 = vector.broadcast %cst_5 : f32 to vector<2x32xf32>
    %8 = arith.maximumf %6, %7 : vector<2x32xf32>
    %c0_6 = arith.constant 0 : index
    %c0_7 = arith.constant 0 : index
    %9 = vector.load %arg4[%c0_6, %c0_7] : memref<32x32xf32, #tpu.memory_space<vmem>>, vector<32x32xf32>
    %cst_8 = arith.constant dense<0.000000e+00> : vector<2x32xf32>
    %10 = tpu.matmul %8, %9, %cst_8 {dimension_numbers = #tpu.dot_dimension_numbers<[1], [0], [0], [1], [0, 0, 1, 1], [], []>} : vector<2x32xf32>, vector<32x32xf32>, vector<2x32xf32> -> vector<2x32xf32>
    %c0_9 = arith.constant 0 : index
    %c0_10 = arith.constant 0 : index
    %11 = vector.load %arg5[%c0_9, %c0_10] : memref<1x32xf32, #tpu.memory_space<vmem>>, vector<1x32xf32>
    %12 = vector.broadcast %11 : vector<1x32xf32> to vector<2x32xf32>
    %13 = arith.addf %10, %12 : vector<2x32xf32>
    %cst_11 = arith.constant 0.000000e+00 : f32
    %14 = vector.broadcast %cst_11 : f32 to vector<2x32xf32>
    %15 = arith.maximumf %13, %14 : vector<2x32xf32>
    %cst_12 = arith.constant dense<0xFF800000> : vector<2xf32>
    %16 = vector.multi_reduction <maximumf>, %15, %cst_12 [1] : vector<2x32xf32> to vector<2xf32>
    %17 = vector.shape_cast %16 : vector<2xf32> to vector<2x1xf32>
    %18 = vector.broadcast %17 : vector<2x1xf32> to vector<2x32xf32>
    %19 = arith.subf %15, %18 : vector<2x32xf32>
    %20 = math.exp %19 : vector<2x32xf32>
    %cst_13 = arith.constant dense<0.000000e+00> : vector<2xf32>
    %21 = vector.multi_reduction <add>, %20, %cst_13 [1] : vector<2x32xf32> to vector<2xf32>
    %22 = vector.shape_cast %21 : vector<2xf32> to vector<2x1xf32>
    %23 = math.log %22 : vector<2x1xf32>
    %24 = vector.broadcast %23 : vector<2x1xf32> to vector<2x32xf32>
    %25 = arith.subf %19, %24 : vector<2x32xf32>
    %c0_14 = arith.constant 0 : index
    %c0_15 = arith.constant 0 : index
    %26 = vector.load %arg6[%c0_14, %c0_15] : memref<2x32xf32, #tpu.memory_space<vmem>>, vector<2x32xf32>
    tpu.vector_store %arg6[%c0_14, %c0_15], %25 {strides = array<i32>} : memref<2x32xf32, #tpu.memory_space<vmem>>, vector<2x32xf32>,
    return
  }
  func.func @transform_0(%arg0: i32) -> (i32, i32) {
    %c0_i32 = arith.constant 0 : i32
    %c0_i32_0 = arith.constant 0 : i32
    return %arg0, %c0_i32 : i32, i32
  }
  func.func @transform_1(%arg0: i32) -> (i32, i32) {
    %c0_i32 = arith.constant 0 : i32
    %c0_i32_0 = arith.constant 0 : i32
    %c0_i32_1 = arith.constant 0 : i32
    return %c0_i32, %c0_i32_0 : i32, i32
  }
  func.func @transform_2(%arg0: i32) -> (i32, i32) {
    %c0_i32 = arith.constant 0 : i32
    %c0_i32_0 = arith.constant 0 : i32
    %c0_i32_1 = arith.constant 0 : i32
    return %c0_i32, %c0_i32_0 : i32, i32
  }
  func.func @transform_3(%arg0: i32) -> (i32, i32) {
    %c0_i32 = arith.constant 0 : i32
    %c0_i32_0 = arith.constant 0 : i32
    %c0_i32_1 = arith.constant 0 : i32
    return %c0_i32, %c0_i32_0 : i32, i32
  }
  func.func @transform_4(%arg0: i32) -> (i32, i32) {
    %c0_i32 = arith.constant 0 : i32
    %c0_i32_0 = arith.constant 0 : i32
    %c0_i32_1 = arith.constant 0 : i32
    return %c0_i32, %c0_i32_0 : i32, i32
  }
  func.func @transform_5(%arg0: i32) -> (i32, i32) {
    %c0_i32 = arith.constant 0 : i32
    %c0_i32_0 = arith.constant 0 : i32
    return %arg0, %c0_i32 : i32, i32
  }
}

</mosaic_0001>

<llo_original>
// kernel: firstnet_forward.1
$region0: #{firstnet_forward.1}
  #allocation0 [shape = 'u32[]', space=smem, size = 0x4, offset = 0x4, fixed_abs, tag = 'smem constant byte address 0x4 - core index']
  #allocation1 [shape = 'u32[72,128]{1,0:T(1,128)}', space=vmem, size = 0x9000, scoped, tag = 'internal scratch']
  %s0 = inlined_call_operand.vmem [shape: f32[2,1024], index: 0, kind: input, shape index: {}]
  %s1 = inlined_call_operand.vmem [shape: bf16[1024,32], index: 1, kind: input, shape index: {}]
  %s2 = inlined_call_operand.vmem [shape: f32[1,32], index: 2, kind: input, shape index: {}]
  %s3 = inlined_call_operand.vmem [shape: f32[32,32], index: 3, kind: input, shape index: {}]
  %s4 = inlined_call_operand.vmem [shape: f32[1,32], index: 4, kind: input, shape index: {}]
  %s5 = inlined_call_operand.hbm [shape: f32[2,32], index: 5, kind: output, shape index: {}]
  %s6 = sld [smem:[#allocation0]]
  $region30: #{firstnet_forward.1} parent=0
    _
  %s8 = ssub.s32 1, %s6
  %s9 = scalar_select 0, %s8, %s6
  $region1: #{firstnet_forward.1} parent=0
    #allocation2 [shape = 'u8[1024]{0}', space=vmem, size = 0x400, scoped, tag = 'output window, operand 0, single buffered']
    #allocation3 [shape = 's32[1]{0}', space=sflag, size = 0x4, scoped, tag = 'scoped memory for firstnet_forward.1']
    %10 = vsyncpa [#allocation3], 0
    // Predicated region
    $region2: #{firstnet_forward.1} parent=1 // pred_check
      _
    $region3: #{firstnet_forward.1} parent=1 // pred_check_branch
      %12 = sbr.rel (0) target = $region5
    $region4: #{firstnet_forward.1} parent=1 // pred_region
      _
    $region5: #{firstnet_forward.1} parent=1 // pred_fallthru
      _
    // Predicated region
    $region6: #{firstnet_forward.1} parent=1 // pred_check
      _
    $region7: #{firstnet_forward.1} parent=1 // pred_check_branch
      %14 = sbr.rel (0) target = $region9
    $region8: #{firstnet_forward.1} parent=1 // pred_region
      _
    $region9: #{firstnet_forward.1} parent=1 // pred_fallthru
      _
    // Predicated region
    $region10: #{firstnet_forward.1} parent=1 // pred_check
      _
    $region11: #{firstnet_forward.1} parent=1 // pred_check_branch
      %16 = sbr.rel (0) target = $region13
    $region12: #{firstnet_forward.1} parent=1 // pred_region
      _
    $region13: #{firstnet_forward.1} parent=1 // pred_fallthru
      _
    // Predicated region
    $region14: #{firstnet_forward.1} parent=1 // pred_check
      _
    $region15: #{firstnet_forward.1} parent=1 // pred_check_branch
      %18 = sbr.rel (0) target = $region17
    $region16: #{firstnet_forward.1} parent=1 // pred_region
      _
    $region17: #{firstnet_forward.1} parent=1 // pred_fallthru
      _
    // Predicated region
    $region18: #{firstnet_forward.1} parent=1 // pred_check
      _
    $region19: #{firstnet_forward.1} parent=1 // pred_check_branch
      %20 = sbr.rel (0) target = $region21
    $region20: #{firstnet_forward.1} parent=1 // pred_region
      _
    $region21: #{firstnet_forward.1} parent=1 // pred_fallthru
      _
    %v21 = vld [vmem:[%s0] sm:$0xff]
    %v22 = vld [vmem:[%s0 + $0x8] sm:$0xff]
    %25 = vst [vmem:[#allocation1] ss:$4 sm:$0xff] %v21
    %s26 = scalar_lea.vmem [#allocation1], 32
    %27 = vst [vmem:[%s26] ss:$4 sm:$0xff] %v22
    %v28 = vld.sshfl [vmem:[#allocation1] sm:$0xff pattern:$0x73625140]
    %v29 = vld.sshfl [vmem:[#allocation1 + $0x8] sm:$0xff pattern:$0x73625140]
    %v30 = vld.sshfl [vmem:[#allocation1 + $0x10] sm:$0xff pattern:$0x73625140]
    %v31 = vld.sshfl [vmem:[#allocation1 + $0x18] sm:$0xff pattern:$0x73625140]
    %v32 = vld.sshfl [vmem:[#allocation1 + $0x20] sm:$0xff pattern:$0x73625140]
    %v33 = vld.sshfl [vmem:[#allocation1 + $0x28] sm:$0xff pattern:$0x73625140]
    %v34 = vld.sshfl [vmem:[#allocation1 + $0x30] sm:$0xff pattern:$0x73625140]
    %v35 = vld.sshfl [vmem:[#allocation1 + $0x38] sm:$0xff pattern:$0x73625140]
    %v44 = vpack.c.bf16 %v28, %v28
    %v45 = vpack.c.bf16 %v29, %v29
    %v46 = vpack.c.bf16 %v30, %v30
    %v47 = vpack.c.bf16 %v31, %v31
    %v48 = vpack.c.bf16 %v32, %v32
    %v49 = vpack.c.bf16 %v33, %v33
    %v50 = vpack.c.bf16 %v34, %v34
    %v51 = vpack.c.bf16 %v35, %v35
    %v52 = vld [vmem:[%s1] sm:$0xf]
    %v53 = vld [vmem:[%s1 + $0x4] sm:$0xf]
    %v54 = vld [vmem:[%s1 + $0x8] sm:$0xf]
    %v55 = vld [vmem:[%s1 + $0xc] sm:$0xf]
    %v56 = vld [vmem:[%s1 + $0x10] sm:$0xf]
    %v57 = vld [vmem:[%s1 + $0x14] sm:$0xf]
    %v58 = vld [vmem:[%s1 + $0x18] sm:$0xf]
    %v59 = vld [vmem:[%s1 + $0x1c] sm:$0xf]
    %v60 = vld [vmem:[%s1 + $0x20] sm:$0xf]
    %v61 = vld [vmem:[%s1 + $0x24] sm:$0xf]
    %v62 = vld [vmem:[%s1 + $0x28] sm:$0xf]
    %v63 = vld [vmem:[%s1 + $0x2c] sm:$0xf]
    %v64 = vld [vmem:[%s1 + $0x30] sm:$0xf]
    %v65 = vld [vmem:[%s1 + $0x34] sm:$0xf]
    %v66 = vld [vmem:[%s1 + $0x38] sm:$0xf]
    %v67 = vld [vmem:[%s1 + $0x3c] sm:$0xf]
    %v68 = vld [vmem:[%s1 + $0x40] sm:$0xf]
    %v69 = vld [vmem:[%s1 + $0x44] sm:$0xf]
    %v70 = vld [vmem:[%s1 + $0x48] sm:$0xf]
    %v71 = vld [vmem:[%s1 + $0x4c] sm:$0xf]
    %v72 = vld [vmem:[%s1 + $0x50] sm:$0xf]
    %v73 = vld [vmem:[%s1 + $0x54] sm:$0xf]
    %v74 = vld [vmem:[%s1 + $0x58] sm:$0xf]
    %v75 = vld [vmem:[%s1 + $0x5c] sm:$0xf]
    %v76 = vld [vmem:[%s1 + $0x60] sm:$0xf]
    %v77 = vld [vmem:[%s1 + $0x64] sm:$0xf]
    %v78 = vld [vmem:[%s1 + $0x68] sm:$0xf]
    %v79 = vld [vmem:[%s1 + $0x6c] sm:$0xf]
    %v80 = vld [vmem:[%s1 + $0x70] sm:$0xf]
    %v81 = vld [vmem:[%s1 + $0x74] sm:$0xf]
    %v82 = vld [vmem:[%s1 + $0x78] sm:$0xf]
    %v83 = vld [vmem:[%s1 + $0x7c] sm:$0xf]
    %v84 = vld [vmem:[%s1 + $0x80] sm:$0xf]
    %v85 = vld [vmem:[%s1 + $0x84] sm:$0xf]
    %v86 = vld [vmem:[%s1 + $0x88] sm:$0xf]
    %v87 = vld [vmem:[%s1 + $0x8c] sm:$0xf]
    %v88 = vld [vmem:[%s1 + $0x90] sm:$0xf]
    %v89 = vld [vmem:[%s1 + $0x94] sm:$0xf]
    %v90 = vld [vmem:[%s1 + $0x98] sm:$0xf]
    %v91 = vld [vmem:[%s1 + $0x9c] sm:$0xf]
    %v92 = vld [vmem:[%s1 + $0xa0] sm:$0xf]
    %v93 = vld [vmem:[%s1 + $0xa4] sm:$0xf]
    %v94 = vld [vmem:[%s1 + $0xa8] sm:$0xf]
    %v95 = vld [vmem:[%s1 + $0xac] sm:$0xf]
    %v96 = vld [vmem:[%s1 + $0xb0] sm:$0xf]
    %v97 = vld [vmem:[%s1 + $0xb4] sm:$0xf]
    %v98 = vld [vmem:[%s1 + $0xb8] sm:$0xf]
    %v99 = vld [vmem:[%s1 + $0xbc] sm:$0xf]
    %v100 = vld [vmem:[%s1 + $0xc0] sm:$0xf]
    %v101 = vld [vmem:[%s1 + $0xc4] sm:$0xf]
    %v102 = vld [vmem:[%s1 + $0xc8] sm:$0xf]
    %v103 = vld [vmem:[%s1 + $0xcc] sm:$0xf]
    %v104 = vld [vmem:[%s1 + $0xd0] sm:$0xf]
    %v105 = vld [vmem:[%s1 + $0xd4] sm:$0xf]
    %v106 = vld [vmem:[%s1 + $0xd8] sm:$0xf]
    %v107 = vld [vmem:[%s1 + $0xdc] sm:$0xf]
    %v108 = vld [vmem:[%s1 + $0xe0] sm:$0xf]
    %v109 = vld [vmem:[%s1 + $0xe4] sm:$0xf]
    %v110 = vld [vmem:[%s1 + $0xe8] sm:$0xf]
    %v111 = vld [vmem:[%s1 + $0xec] sm:$0xf]
    %v112 = vld [vmem:[%s1 + $0xf0] sm:$0xf]
    %v113 = vld [vmem:[%s1 + $0xf4] sm:$0xf]
    %v114 = vld [vmem:[%s1 + $0xf8] sm:$0xf]
    %v115 = vld [vmem:[%s1 + $0xfc] sm:$0xf]
    %v116 = vld [vmem:[%s1 + $0x100] sm:$0xf]
    %v117 = vld [vmem:[%s1 + $0x104] sm:$0xf]
    %v118 = vld [vmem:[%s1 + $0x108] sm:$0xf]
    %v119 = vld [vmem:[%s1 + $0x10c] sm:$0xf]
    %v120 = vld [vmem:[%s1 + $0x110] sm:$0xf]
    %v121 = vld [vmem:[%s1 + $0x114] sm:$0xf]
    %v122 = vld [vmem:[%s1 + $0x118] sm:$0xf]
    %v123 = vld [vmem:[%s1 + $0x11c] sm:$0xf]
    %v124 = vld [vmem:[%s1 + $0x120] sm:$0xf]
    %v125 = vld [vmem:[%s1 + $0x124] sm:$0xf]
    %v126 = vld [vmem:[%s1 + $0x128] sm:$0xf]
    %v127 = vld [vmem:[%s1 + $0x12c] sm:$0xf]
    %v128 = vld [vmem:[%s1 + $0x130] sm:$0xf]
    %v129 = vld [vmem:[%s1 + $0x134] sm:$0xf]
    %v130 = vld [vmem:[%s1 + $0x138] sm:$0xf]
    %v131 = vld [vmem:[%s1 + $0x13c] sm:$0xf]
    %v132 = vld [vmem:[%s1 + $0x140] sm:$0xf]
    %v133 = vld [vmem:[%s1 + $0x144] sm:$0xf]
    %v134 = vld [vmem:[%s1 + $0x148] sm:$0xf]
    %v135 = vld [vmem:[%s1 + $0x14c] sm:$0xf]
    %v136 = vld [vmem:[%s1 + $0x150] sm:$0xf]
    %v137 = vld [vmem:[%s1 + $0x154] sm:$0xf]
    %v138 = vld [vmem:[%s1 + $0x158] sm:$0xf]
    %v139 = vld [vmem:[%s1 + $0x15c] sm:$0xf]
    %v140 = vld [vmem:[%s1 + $0x160] sm:$0xf]
    %v141 = vld [vmem:[%s1 + $0x164] sm:$0xf]
    %v142 = vld [vmem:[%s1 + $0x168] sm:$0xf]
    %v143 = vld [vmem:[%s1 + $0x16c] sm:$0xf]
    %v144 = vld [vmem:[%s1 + $0x170] sm:$0xf]
    %v145 = vld [vmem:[%s1 + $0x174] sm:$0xf]
    %v146 = vld [vmem:[%s1 + $0x178] sm:$0xf]
    %v147 = vld [vmem:[%s1 + $0x17c] sm:$0xf]
    %v148 = vld [vmem:[%s1 + $0x180] sm:$0xf]
    %v149 = vld [vmem:[%s1 + $0x184] sm:$0xf]
    %v150 = vld [vmem:[%s1 + $0x188] sm:$0xf]
    %v151 = vld [vmem:[%s1 + $0x18c] sm:$0xf]
    %v152 = vld [vmem:[%s1 + $0x190] sm:$0xf]
    %v153 = vld [vmem:[%s1 + $0x194] sm:$0xf]
    %v154 = vld [vmem:[%s1 + $0x198] sm:$0xf]
    %v155 = vld [vmem:[%s1 + $0x19c] sm:$0xf]
    %v156 = vld [vmem:[%s1 + $0x1a0] sm:$0xf]
    %v157 = vld [vmem:[%s1 + $0x1a4] sm:$0xf]
    %v158 = vld [vmem:[%s1 + $0x1a8] sm:$0xf]
    %v159 = vld [vmem:[%s1 + $0x1ac] sm:$0xf]
    %v160 = vld [vmem:[%s1 + $0x1b0] sm:$0xf]
    %v161 = vld [vmem:[%s1 + $0x1b4] sm:$0xf]
    %v162 = vld [vmem:[%s1 + $0x1b8] sm:$0xf]
    %v163 = vld [vmem:[%s1 + $0x1bc] sm:$0xf]
    %v164 = vld [vmem:[%s1 + $0x1c0] sm:$0xf]
    %v165 = vld [vmem:[%s1 + $0x1c4] sm:$0xf]
    %v166 = vld [vmem:[%s1 + $0x1c8] sm:$0xf]
    %v167 = vld [vmem:[%s1 + $0x1cc] sm:$0xf]
    %v168 = vld [vmem:[%s1 + $0x1d0] sm:$0xf]
    %v169 = vld [vmem:[%s1 + $0x1d4] sm:$0xf]
    %v170 = vld [vmem:[%s1 + $0x1d8] sm:$0xf]
    %v171 = vld [vmem:[%s1 + $0x1dc] sm:$0xf]
    %v172 = vld [vmem:[%s1 + $0x1e0] sm:$0xf]
    %v173 = vld [vmem:[%s1 + $0x1e4] sm:$0xf]
    %v174 = vld [vmem:[%s1 + $0x1e8] sm:$0xf]
    %v175 = vld [vmem:[%s1 + $0x1ec] sm:$0xf]
    %v176 = vld [vmem:[%s1 + $0x1f0] sm:$0xf]
    %v177 = vld [vmem:[%s1 + $0x1f4] sm:$0xf]
    %v178 = vld [vmem:[%s1 + $0x1f8] sm:$0xf]
    %v179 = vld [vmem:[%s1 + $0x1fc] sm:$0xf]
    %v180 = vld [vmem:[%s2] sm:$0x1]
    %v182 = vperm.slane %v180, 0
    %v312 = vunpack.c.l.b16 %v52
    %v313 = vunpack.c.l.b16 %v53
    %v314 = vunpack.c.l.b16 %v54
    %v315 = vunpack.c.l.b16 %v55
    %v316 = vunpack.c.l.b16 %v56
    %v317 = vunpack.c.l.b16 %v57
    %v318 = vunpack.c.l.b16 %v58
    %v319 = vunpack.c.l.b16 %v59
    %v320 = vunpack.c.l.b16 %v60
    %v321 = vunpack.c.l.b16 %v61
    %v322 = vunpack.c.l.b16 %v62
    %v323 = vunpack.c.l.b16 %v63
    %v324 = vunpack.c.l.b16 %v64
    %v325 = vunpack.c.l.b16 %v65
    %v326 = vunpack.c.l.b16 %v66
    %v327 = vunpack.c.l.b16 %v67
    %v328 = vunpack.c.l.b16 %v68
    %v329 = vunpack.c.l.b16 %v69
    %v330 = vunpack.c.l.b16 %v70
    %v331 = vunpack.c.l.b16 %v71
    %v332 = vunpack.c.l.b16 %v72
    %v333 = vunpack.c.l.b16 %v73
    %v334 = vunpack.c.l.b16 %v74
    %v335 = vunpack.c.l.b16 %v75
    %v336 = vunpack.c.l.b16 %v76
    %v337 = vunpack.c.l.b16 %v77
    %v338 = vunpack.c.l.b16 %v78
    %v339 = vunpack.c.l.b16 %v79
    %v340 = vunpack.c.l.b16 %v80
    %v341 = vunpack.c.l.b16 %v81
    %v342 = vunpack.c.l.b16 %v82
    %v343 = vunpack.c.l.b16 %v83
    %v344 = vunpack.c.l.b16 %v84
    %v345 = vunpack.c.l.b16 %v85
    %v346 = vunpack.c.l.b16 %v86
    %v347 = vunpack.c.l.b16 %v87
    %v348 = vunpack.c.l.b16 %v88
    %v349 = vunpack.c.l.b16 %v89
    %v350 = vunpack.c.l.b16 %v90
    %v351 = vunpack.c.l.b16 %v91
    %v352 = vunpack.c.l.b16 %v92
    %v353 = vunpack.c.l.b16 %v93
    %v354 = vunpack.c.l.b16 %v94
    %v355 = vunpack.c.l.b16 %v95
    %v356 = vunpack.c.l.b16 %v96
    %v357 = vunpack.c.l.b16 %v97
    %v358 = vunpack.c.l.b16 %v98
    %v359 = vunpack.c.l.b16 %v99
    %v360 = vunpack.c.l.b16 %v100
    %v361 = vunpack.c.l.b16 %v101
    %v362 = vunpack.c.l.b16 %v102
    %v363 = vunpack.c.l.b16 %v103
    %v364 = vunpack.c.l.b16 %v104
    %v365 = vunpack.c.l.b16 %v105
    %v366 = vunpack.c.l.b16 %v106
    %v367 = vunpack.c.l.b16 %v107
    %v368 = vunpack.c.l.b16 %v108
    %v369 = vunpack.c.l.b16 %v109
    %v370 = vunpack.c.l.b16 %v110
    %v371 = vunpack.c.l.b16 %v111
    %v372 = vunpack.c.l.b16 %v112
    %v373 = vunpack.c.l.b16 %v113
    %v374 = vunpack.c.l.b16 %v114
    %v375 = vunpack.c.l.b16 %v115
    %v376 = vunpack.c.l.b16 %v116
    %v377 = vunpack.c.l.b16 %v117
    %v378 = vunpack.c.l.b16 %v118
    %v379 = vunpack.c.l.b16 %v119
    %v380 = vunpack.c.l.b16 %v120
    %v381 = vunpack.c.l.b16 %v121
    %v382 = vunpack.c.l.b16 %v122
    %v383 = vunpack.c.l.b16 %v123
    %v384 = vunpack.c.l.b16 %v124
    %v385 = vunpack.c.l.b16 %v125
    %v386 = vunpack.c.l.b16 %v126
    %v387 = vunpack.c.l.b16 %v127
    %v388 = vunpack.c.l.b16 %v128
    %v389 = vunpack.c.l.b16 %v129
    %v390 = vunpack.c.l.b16 %v130
    %v391 = vunpack.c.l.b16 %v131
    %v392 = vunpack.c.l.b16 %v132
    %v393 = vunpack.c.l.b16 %v133
    %v394 = vunpack.c.l.b16 %v134
    %v395 = vunpack.c.l.b16 %v135
    %v396 = vunpack.c.l.b16 %v136
    %v397 = vunpack.c.l.b16 %v137
    %v398 = vunpack.c.l.b16 %v138
    %v399 = vunpack.c.l.b16 %v139
    %v400 = vunpack.c.l.b16 %v140
    %v401 = vunpack.c.l.b16 %v141
    %v402 = vunpack.c.l.b16 %v142
    %v403 = vunpack.c.l.b16 %v143
    %v404 = vunpack.c.l.b16 %v144
    %v405 = vunpack.c.l.b16 %v145
    %v406 = vunpack.c.l.b16 %v146
    %v407 = vunpack.c.l.b16 %v147
    %v408 = vunpack.c.l.b16 %v148
    %v409 = vunpack.c.l.b16 %v149
    %v410 = vunpack.c.l.b16 %v150
    %v411 = vunpack.c.l.b16 %v151
    %v412 = vunpack.c.l.b16 %v152
    %v413 = vunpack.c.l.b16 %v153
    %v414 = vunpack.c.l.b16 %v154
    %v415 = vunpack.c.l.b16 %v155
    %v416 = vunpack.c.l.b16 %v156
    %v417 = vunpack.c.l.b16 %v157
    %v418 = vunpack.c.l.b16 %v158
    %v419 = vunpack.c.l.b16 %v159
    %v420 = vunpack.c.l.b16 %v160
    %v421 = vunpack.c.l.b16 %v161
    %v422 = vunpack.c.l.b16 %v162
    %v423 = vunpack.c.l.b16 %v163
    %v424 = vunpack.c.l.b16 %v164
    %v425 = vunpack.c.l.b16 %v165
    %v426 = vunpack.c.l.b16 %v166
    %v427 = vunpack.c.l.b16 %v167
    %v428 = vunpack.c.l.b16 %v168
    %v429 = vunpack.c.l.b16 %v169
    %v430 = vunpack.c.l.b16 %v170
    %v431 = vunpack.c.l.b16 %v171
    %v432 = vunpack.c.l.b16 %v172
    %v433 = vunpack.c.l.b16 %v173
    %v434 = vunpack.c.l.b16 %v174
    %v435 = vunpack.c.l.b16 %v175
    %v436 = vunpack.c.l.b16 %v176
    %v437 = vunpack.c.l.b16 %v177
    %v438 = vunpack.c.l.b16 %v178
    %v439 = vunpack.c.l.b16 %v179
    %v440 = vpack.c.b16 %v313, %v312
    %v441 = vpack.c.b16 %v315, %v314
    %v442 = vpack.c.b16 %v317, %v316
    %v443 = vpack.c.b16 %v319, %v318
    %v444 = vpack.c.b16 %v321, %v320
    %v445 = vpack.c.b16 %v323, %v322
    %v446 = vpack.c.b16 %v325, %v324
    %v447 = vpack.c.b16 %v327, %v326
    %v448 = vpack.c.b16 %v329, %v328
    %v449 = vpack.c.b16 %v331, %v330
    %v450 = vpack.c.b16 %v333, %v332
    %v451 = vpack.c.b16 %v335, %v334
    %v452 = vpack.c.b16 %v337, %v336
    %v453 = vpack.c.b16 %v339, %v338
    %v454 = vpack.c.b16 %v341, %v340
    %v455 = vpack.c.b16 %v343, %v342
    %v456 = vpack.c.b16 %v345, %v344
    %v457 = vpack.c.b16 %v347, %v346
    %v458 = vpack.c.b16 %v349, %v348
    %v459 = vpack.c.b16 %v351, %v350
    %v460 = vpack.c.b16 %v353, %v352
    %v461 = vpack.c.b16 %v355, %v354
    %v462 = vpack.c.b16 %v357, %v356
    %v463 = vpack.c.b16 %v359, %v358
    %v464 = vpack.c.b16 %v361, %v360
    %v465 = vpack.c.b16 %v363, %v362
    %v466 = vpack.c.b16 %v365, %v364
    %v467 = vpack.c.b16 %v367, %v366
    %v468 = vpack.c.b16 %v369, %v368
    %v469 = vpack.c.b16 %v371, %v370
    %v470 = vpack.c.b16 %v373, %v372
    %v471 = vpack.c.b16 %v375, %v374
    %v472 = vpack.c.b16 %v377, %v376
    %v473 = vpack.c.b16 %v379, %v378
    %v474 = vpack.c.b16 %v381, %v380
    %v475 = vpack.c.b16 %v383, %v382
    %v476 = vpack.c.b16 %v385, %v384
    %v477 = vpack.c.b16 %v387, %v386
    %v478 = vpack.c.b16 %v389, %v388
    %v479 = vpack.c.b16 %v391, %v390
    %v480 = vpack.c.b16 %v393, %v392
    %v481 = vpack.c.b16 %v395, %v394
    %v482 = vpack.c.b16 %v397, %v396
    %v483 = vpack.c.b16 %v399, %v398
    %v484 = vpack.c.b16 %v401, %v400
    %v485 = vpack.c.b16 %v403, %v402
    %v486 = vpack.c.b16 %v405, %v404
    %v487 = vpack.c.b16 %v407, %v406
    %v488 = vpack.c.b16 %v409, %v408
    %v489 = vpack.c.b16 %v411, %v410
    %v490 = vpack.c.b16 %v413, %v412
    %v491 = vpack.c.b16 %v415, %v414
    %v492 = vpack.c.b16 %v417, %v416
    %v493 = vpack.c.b16 %v419, %v418
    %v494 = vpack.c.b16 %v421, %v420
    %v495 = vpack.c.b16 %v423, %v422
    %v496 = vpack.c.b16 %v425, %v424
    %v497 = vpack.c.b16 %v427, %v426
    %v498 = vpack.c.b16 %v429, %v428
    %v499 = vpack.c.b16 %v431, %v430
    %v500 = vpack.c.b16 %v433, %v432
    %v501 = vpack.c.b16 %v435, %v434
    %v502 = vpack.c.b16 %v437, %v436
    %v503 = vpack.c.b16 %v439, %v438
    %568 = vmatpush.bf16.msra.mxu0 %v447
    %569 = vmatpush.bf16.msra.mxu0 %v446
    %570 = vmatpush.bf16.msra.mxu0 %v445
    %571 = vmatpush.bf16.msra.mxu0 %v444
    %572 = vmatpush.bf16.msra.mxu0 %v443
    %573 = vmatpush.bf16.msra.mxu0 %v442
    %574 = vmatpush.bf16.msra.mxu0 %v441
    %575 = vmatpush.bf16.msra.mxu0 %v440
    %576 = vmatmul.bf16.gmra.mxu0 %v44
    %v577 = vpop.f32.mrf.mxu0
    %v578 = vadd.f32 %v182, %v577
    %v579 = vpop.f32.mrf.mxu0
    %580 = vdwg.mxu0
    %581 = vmatpush.bf16.msra.mxu0 %v455
    %582 = vmatpush.bf16.msra.mxu0 %v454
    %583 = vmatpush.bf16.msra.mxu0 %v453
    %584 = vmatpush.bf16.msra.mxu0 %v452
    %585 = vmatpush.bf16.msra.mxu0 %v451
    %586 = vmatpush.bf16.msra.mxu0 %v450
    %587 = vmatpush.bf16.msra.mxu0 %v449
    %588 = vmatpush.bf16.msra.mxu0 %v448
    %589 = vmatmul.bf16.gmra.mxu0 %v45
    %v590 = vpop.f32.mrf.mxu0
    %v591 = vadd.f32 %v578, %v590
    %v592 = vpop.f32.mrf.mxu0
    %593 = vdwg.mxu0
    %594 = vmatpush.bf16.msra.mxu0 %v463
    %595 = vmatpush.bf16.msra.mxu0 %v462
    %596 = vmatpush.bf16.msra.mxu0 %v461
    %597 = vmatpush.bf16.msra.mxu0 %v460
    %598 = vmatpush.bf16.msra.mxu0 %v459
    %599 = vmatpush.bf16.msra.mxu0 %v458
    %600 = vmatpush.bf16.msra.mxu0 %v457
    %601 = vmatpush.bf16.msra.mxu0 %v456
    %602 = vmatmul.bf16.gmra.mxu0 %v46
    %v603 = vpop.f32.mrf.mxu0
    %v604 = vadd.f32 %v591, %v603
    %v605 = vpop.f32.mrf.mxu0
    %606 = vdwg.mxu0
    %607 = vmatpush.bf16.msra.mxu0 %v471
    %608 = vmatpush.bf16.msra.mxu0 %v470
    %609 = vmatpush.bf16.msra.mxu0 %v469
    %610 = vmatpush.bf16.msra.mxu0 %v468
    %611 = vmatpush.bf16.msra.mxu0 %v467
    %612 = vmatpush.bf16.msra.mxu0 %v466
    %613 = vmatpush.bf16.msra.mxu0 %v465
    %614 = vmatpush.bf16.msra.mxu0 %v464
    %615 = vmatmul.bf16.gmra.mxu0 %v47
    %v616 = vpop.f32.mrf.mxu0
    %v617 = vadd.f32 %v604, %v616
    %v618 = vpop.f32.mrf.mxu0
    %619 = vdwg.mxu0
    %620 = vmatpush.bf16.msra.mxu0 %v479
    %621 = vmatpush.bf16.msra.mxu0 %v478
    %622 = vmatpush.bf16.msra.mxu0 %v477
    %623 = vmatpush.bf16.msra.mxu0 %v476
    %624 = vmatpush.bf16.msra.mxu0 %v475
    %625 = vmatpush.bf16.msra.mxu0 %v474
    %626 = vmatpush.bf16.msra.mxu0 %v473
    %627 = vmatpush.bf16.msra.mxu0 %v472
    %628 = vmatmul.bf16.gmra.mxu0 %v48
    %v629 = vpop.f32.mrf.mxu0
    %v630 = vadd.f32 %v617, %v629
    %v631 = vpop.f32.mrf.mxu0
    %632 = vdwg.mxu0
    %633 = vmatpush.bf16.msra.mxu0 %v487
    %634 = vmatpush.bf16.msra.mxu0 %v486
    %635 = vmatpush.bf16.msra.mxu0 %v485
    %636 = vmatpush.bf16.msra.mxu0 %v484
    %637 = vmatpush.bf16.msra.mxu0 %v483
    %638 = vmatpush.bf16.msra.mxu0 %v482
    %639 = vmatpush.bf16.msra.mxu0 %v481
    %640 = vmatpush.bf16.msra.mxu0 %v480
    %641 = vmatmul.bf16.gmra.mxu0 %v49
    %v642 = vpop.f32.mrf.mxu0
    %v643 = vadd.f32 %v630, %v642
    %v644 = vpop.f32.mrf.mxu0
    %645 = vdwg.mxu0
    %646 = vmatpush.bf16.msra.mxu0 %v495
    %647 = vmatpush.bf16.msra.mxu0 %v494
    %648 = vmatpush.bf16.msra.mxu0 %v493
    %649 = vmatpush.bf16.msra.mxu0 %v492
    %650 = vmatpush.bf16.msra.mxu0 %v491
    %651 = vmatpush.bf16.msra.mxu0 %v490
    %652 = vmatpush.bf16.msra.mxu0 %v489
    %653 = vmatpush.bf16.msra.mxu0 %v488
    %654 = vmatmul.bf16.gmra.mxu0 %v50
    %v655 = vpop.f32.mrf.mxu0
    %v656 = vadd.f32 %v643, %v655
    %v657 = vpop.f32.mrf.mxu0
    %658 = vdwg.mxu0
    %659 = vmatpush.bf16.msra.mxu0 %v503
    %660 = vmatpush.bf16.msra.mxu0 %v502
    %661 = vmatpush.bf16.msra.mxu0 %v501
    %662 = vmatpush.bf16.msra.mxu0 %v500
    %663 = vmatpush.bf16.msra.mxu0 %v499
    %664 = vmatpush.bf16.msra.mxu0 %v498
    %665 = vmatpush.bf16.msra.mxu0 %v497
    %666 = vmatpush.bf16.msra.mxu0 %v496
    %667 = vmatmul.bf16.gmra.mxu0 %v51
    %v668 = vpop.f32.mrf.mxu0
    %v669 = vadd.f32 %v656, %v668
    %v670 = vpop.f32.mrf.mxu0
    %671 = vdwg.mxu0
    %v672 = vmax.f32 %v669, 0.0
    %v673 = vld [vmem:[%s3] sm:$0xff]
    %v674 = vld [vmem:[%s3 + $0x8] sm:$0xff]
    %v675 = vld [vmem:[%s3 + $0x10] sm:$0xff]
    %v676 = vld [vmem:[%s3 + $0x18] sm:$0xff]
    %v677 = vld [vmem:[%s4] sm:$0x1]
    %v679 = vperm.slane %v677, 0
    %vm681 = vcmask 261120
    %v683 = vsel %vm681, %v672, 0
    %685 = vmatpush.msra.mxu0 0.0
    %686 = vmatpush.msra.mxu0 0.0
    %687 = vmatpush.msra.mxu0 0.0
    %688 = vmatpush.msra.mxu0 0.0
    %689 = vmatpush.msra.mxu0 0.0
    %690 = vmatpush.msra.mxu0 0.0
    %691 = vmatpush.msra.mxu0 0.0
    %692 = vmatpush.msra.mxu0 0.0
    %693 = vmatpush.msra.mxu0 0.0
    %694 = vmatpush.msra.mxu0 0.0
    %695 = vmatpush.msra.mxu0 0.0
    %696 = vmatpush.msra.mxu0 0.0
    %697 = vmatpush.msra.mxu0 %v676
    %698 = vmatpush.msra.mxu0 %v675
    %699 = vmatpush.msra.mxu0 %v674
    %700 = vmatpush.msra.mxu0 %v673
    %701 = vmatmul.f32.gmra.mxu0 %v683
    %v702 = vpop.f32.mrf.mxu0
    %v703 = vadd.f32 %v679, %v702
    %704 = vdwg.mxu0
    %v705 = vmax.f32 %v703, 0.0
    %vm706 = vcmask 254976
    %v707 = vsel %vm706, %v705, -inf
    %708 = vmax.xlane.f32.xlu0 %v707
    %v709 = vpop.xlane.xlu0 %708
    %v710 = vsub.f32 %v705, %v709
    %v711 = vmul.f32 %v710, 1.442695
    %v712 = vpow.pop %v711
    %v713 = vsel %vm706, %v712, 0.0
    %714 = vadd.xlane.f32.xlu0 %v713
    %v715 = vpop.xlane.xlu0 %714
    %v716 = vlog2.pop %v715
    %v717 = vmul.f32 %v716, 0.6931472
    %v718 = vsub.f32 %v710, %v717
    %719 = vst.msk [vmem:[#allocation2] sm:$0x3] %vm706, %v718
    // Predicated region
    $region22: #{firstnet_forward.1} parent=1 // pred_check
      _
    $region23: #{firstnet_forward.1} parent=1 // pred_check_branch
      %721 = sbr.rel (0) target = $region25
    $region24: #{firstnet_forward.1} parent=1 // pred_region
      %723 = vsyncadd [#allocation3], 0
      %s725 = sshll.u32 [#allocation2], 4
      %s726 = int_to_ptr.vmem [resolvable:$true] %s725
      %s727 = sshll.u32 %s5, 4
      %s728 = int_to_ptr.hbm [resolvable:$true] %s727
      %730 = dma.vmem_to_hbm [thread:$0]  %s726, 32, %s728, [#allocation3]
    $region25: #{firstnet_forward.1} parent=1 // pred_fallthru
      _
    // Predicated region
    $region26: #{firstnet_forward.1} parent=1 // pred_check
      _
    $region27: #{firstnet_forward.1} parent=1 // pred_check_branch
      %732 = sbr.rel (0) target = $region29
    $region28: #{firstnet_forward.1} parent=1 // pred_region
      %734 = dma.done [#allocation3], 32
    $region29: #{firstnet_forward.1} parent=1 // pred_fallthru
      _
    %735 = vsyncpa [#allocation3], 1

</llo_original>
